<compile_context>
chip_gen: v7x
topology: tpu7x:2x2x1
jax: 0.10.0
libtpu: 0.0.40
codegen_flags: <defaults>
</compile_context>

<pallas_src>
import math

import jax
import jax.numpy as jnp
from jax import lax
from jax.experimental import pallas as pl
from jax.experimental.pallas import tpu as pltpu


def _round_up(x, m):
    return (x + m - 1) // m * m


# ----------------------------------------------------------------------------
# Kernel 1: per-session math -> a2 (B, H) bf16.  Runs once per forward.
# ----------------------------------------------------------------------------
def a2_kernel(hidden_ref, ht_ref, mask_ref, wqk_ref, wl_ref, bl_ref, a2_ref):
    hidden = hidden_ref[...]            # (B, L, H) f32
    ht     = ht_ref[...]                # (B, H)    f32
    mask   = mask_ref[...]              # (B, L)    f32
    wqk    = wqk_ref[...]               # (2H, H)   rows = [Wq; Wk] (torch (out, in))
    wl     = wl_ref[...]                # (H, 2H)   linear_transform.weight
    bl     = bl_ref[...]                # (1, H)    linear_transform.bias

    H = hidden.shape[-1]

    # Fused query/key projection: single MXU pass with N = 2H, split by lane slice.
    qk = lax.dot_general(hidden, wqk, (((2,), (1,)), ((), ())),
                         preferred_element_type=jnp.float32)        # (B, L, 2H)
    q = qk[:, :, :H]
    k = qk[:, :, H:]

    # similarity = sigmoid(q @ k^T / sqrt(H))
    sim = lax.dot_general(q, k, (((2,), (2,)), ((0,), (0,))),
                          preferred_element_type=jnp.float32)       # (B, L, L)
    sim = sim * (1.0 / math.sqrt(H))
    sim = 1.0 / (1.0 + jnp.exp(-sim))

    # mask_repeat is mask broadcast along the query axis -> rebuild in-register.
    sim_each = jnp.sum(sim * mask[:, None, :], axis=2)              # (B, L)

    # length = sum(mask) - 1, zeros -> 1
    length = jnp.sum(mask, axis=1, keepdims=True) - 1.0             # (B, 1)
    length = jnp.where(length == 0.0, 1.0, length)
    sim_each = jnp.exp(sim_each / length)

    importance = sim_each * mask
    importance = importance / jnp.sum(importance, axis=1, keepdims=True)

    # Weighted pooling over the sequence.
    a = jnp.sum(importance[:, :, None] * hidden, axis=1)            # (B, H)

    # linear_transform(cat([a, ht], 1)): one K = 2H MXU pass.
    aht = jnp.concatenate([a, ht], axis=1)                          # (B, 2H)
    a2 = lax.dot_general(aht, wl, (((1,), (1,)), ((), ())),
                         preferred_element_type=jnp.float32) + bl   # (B, H)
    a2_ref[...] = a2.astype(a2_ref.dtype)                           # -> bf16


# ----------------------------------------------------------------------------
# Kernel 2: vocab-streamed scores.  One grid step == one (H, TN) table tile.
# No scratch, no inter-step dependency -> grid axis is "parallel".
# ----------------------------------------------------------------------------
def scores_kernel(a2_ref, emb_ref, out_ref):
    # (B, H) bf16 x (H, TN) bf16 -> (B, TN) f32, lane-dense (TN % 128 == 0) store.
    out_ref[...] = lax.dot_general(a2_ref[...], emb_ref[...],
                                   (((1,), (0,)), ((), ())),
                                   preferred_element_type=jnp.float32)


# ----------------------------------------------------------------------------
# One-time parameter prep (hoisted out of the per-call path).
# ----------------------------------------------------------------------------
def prepare_params(params, *, vocab_tile=4096, emb_tile_budget_bytes=12 << 20):
    emb = params["embedding"]            # (V, H) f32
    wq  = params["ie_query"]             # (H, H)
    wk  = params["ie_key"]               # (H, H)
    wl  = params["linear_transform_w"]   # (H, 2H)
    bl  = params["linear_transform_b"]   # (H,)

    V, H = emb.shape
    V1 = V - 1

    # Tile width: largest multiple of 128 <= vocab_tile whose double-buffered
    # bf16 tile fits the per-generation VMEM budget (keeps v7x's 64 MiB happy).
    TN = _round_up(min(max(V1, 1), vocab_tile), 128)
    max_tn = max(128, (emb_tile_budget_bytes // (2 * 2 * H)) // 128 * 128)
    TN = max(128, min(TN, max_tn))
    V_pad = _round_up(max(V1, 1), TN)

    # Transposed, bf16, zero-padded table: TN is the lane dim -> dense vregs,
    # contiguous DMA rows, plain (B,H)x(H,TN) MXU feed even when H < 128.
    emb_t = jnp.zeros((H, V_pad), jnp.bfloat16).at[:, :V1].set(
        emb[1:].T.astype(jnp.bfloat16))

    return {
        "embedding": emb,                                  # f32, for row gathers
        "emb_t_pad": emb_t,                                # (H, V_pad) bf16
        "wqk": jnp.concatenate([wq, wk], axis=0),          # (2H, H) fused q/k weight
        "wl": wl,                                          # (H, 2H)
        "bl2": bl.reshape(1, H),                           # (1, H)
        "V1": int(V1),
        "V_pad": int(V_pad),
        "TN": int(TN),
        "H": int(H),
    }


# ----------------------------------------------------------------------------
# Forward wrapper.
# ----------------------------------------------------------------------------
def session_graph_forward(inputs, mask, mask_repeat, prepared):
    # mask_repeat is a pure broadcast of mask along the query axis; the a2
    # kernel rebuilds it in-register, so it is not shipped to the device.
    del mask_repeat

    emb = prepared["embedding"]
    H = prepared["H"]
    V1 = prepared["V1"]
    V_pad = prepared["V_pad"]
    TN = prepared["TN"]
    B, L = inputs.shape

    # TODO(synk): the embedding row gather + ht gather stay in XLA glue; they
    # could be folded into the a2 kernel via PrefetchScalarGridSpec + pl.Element.
    hidden = emb[inputs]                                        # (B, L, H) f32
    last = jnp.sum(mask.astype(jnp.int32), axis=1) - 1          # (B,)
    ht = hidden[jnp.arange(B), last]                            # (B, H)
    maskf = mask.astype(jnp.float32)

    # --- Kernel 1: per-session math -> a2 (B, H) bf16 (whole arrays in VMEM).
    a2 = pl.pallas_call(
        a2_kernel,
        out_shape=jax.ShapeDtypeStruct((B, H), jnp.bfloat16),
    )(hidden, ht, maskf, prepared["wqk"], prepared["wl"], prepared["bl2"])

    # --- Kernel 2: vocab-streamed scores, parallel grid over table tiles.
    nv = V_pad // TN
    vmem_need = (2 * TN * H * 2          # double-buffered bf16 table tile
                 + 2 * B * TN * 4        # double-buffered f32 output tile
                 + 2 * B * H * 2         # a2 buffers
                 + (2 << 20))            # headroom
    vmem_limit = int(min(max(vmem_need, 16 << 20), 48 << 20))

    grid_spec = pltpu.PrefetchScalarGridSpec(
        num_scalar_prefetch=0,
        grid=(nv,),
        in_specs=[
            pl.BlockSpec((B, H), lambda v: (0, 0)),     # a2 (constant block)
            pl.BlockSpec((H, TN), lambda v: (0, v)),    # streamed table tile
        ],
        out_specs=pl.BlockSpec((B, TN), lambda v: (0, v)),
    )

    scores_pad = pl.pallas_call(
        scores_kernel,
        out_shape=jax.ShapeDtypeStruct((B, V_pad), jnp.float32),
        grid_spec=grid_spec,
        compiler_params=pltpu.CompilerParams(
            # No inter-step dependency -> shardable across TensorCores (v7x).
            dimension_semantics=("parallel",),
            vmem_limit_bytes=vmem_limit,
        ),
        cost_estimate=pl.CostEstimate(
            flops=2 * B * V_pad * H,
            transcendentals=0,
            bytes_accessed=2 * H * V_pad + 4 * B * V_pad + 2 * B * H,
        ),
    )(a2, prepared["emb_t_pad"])

    return scores_pad[:, :V1]                                   # drop padded logits


# ----------------------------------------------------------------------------
# Pure-JAX reference (mirrors the PyTorch forward) for validation.
# ----------------------------------------------------------------------------
def session_graph_reference(inputs, mask, mask_repeat, params):
    emb = params["embedding"]
    H = emb.shape[1]
    hidden = emb[inputs]
    last = jnp.sum(mask.astype(jnp.int32), axis=1) - 1
    ht = hidden[jnp.arange(inputs.shape[0]), last]

    q = hidden @ params["ie_query"].T
    k = hidden @ params["ie_key"].T
    sim = jax.nn.sigmoid(jnp.einsum("bld,bmd->blm", q, k) / math.sqrt(H))
    sim_each = jnp.sum(sim * mask_repeat.astype(jnp.float32), axis=2)
    length = jnp.sum(mask.astype(jnp.float32), axis=1) - 1.0
    length = jnp.where(length == 0.0, 1.0, length)
    sim_each = jnp.exp(sim_each / length[:, None])
    importance = sim_each * mask.astype(jnp.float32)
    importance = importance / jnp.sum(importance, axis=1, keepdims=True)
    a = jnp.sum(importance[:, :, None] * hidden, axis=1)
    cat = jnp.concatenate([a, ht], axis=1)
    a = cat @ params["linear_transform_w"].T + params["linear_transform_b"]
    return a @ emb[1:].T


# ----------------------------------------------------------------------------
# Deterministic parameter init (uniform(-stdv, stdv), stdv = 1/sqrt(H))
# ----------------------------------------------------------------------------
def init_params(key, n_node, hidden_size):
    stdv = 1.0 / math.sqrt(hidden_size)
    ks = jax.random.split(key, 5)
    u = lambda k, shp: jax.random.uniform(k, shp, jnp.float32, -stdv, stdv)
    return {
        "embedding":          u(ks[0], (n_node, hidden_size)),
        "ie_query":           u(ks[1], (hidden_size, hidden_size)),
        "ie_key":             u(ks[2], (hidden_size, hidden_size)),
        "linear_transform_w": u(ks[3], (hidden_size, 2 * hidden_size)),
        "linear_transform_b": u(ks[4], (hidden_size,)),
    }


if __name__ == "__main__":
    B, L, H, V = 2, 8, 32, 40  # batch, seq len, hidden_size, n_node

    key = jax.random.PRNGKey(0)
    kp, ki = jax.random.split(key)
    params = init_params(kp, V, H)
    prepared = prepare_params(params)     # one-time: bf16 transposed padded table

    # sessions of lengths 5 and 8, padded with item id 0
    lengths = jnp.array([5, 8], dtype=jnp.int32)
    pos = jnp.arange(L)[None, :]
    mask = (pos < lengths[:, None]).astype(jnp.int32)                 # (B, L)
    items = jax.random.randint(ki, (B, L), 1, V)
    inputs = jnp.where(mask == 1, items, 0).astype(jnp.int32)         # (B, L)
    mask_repeat = jnp.broadcast_to(mask[:, None, :], (B, L, L))       # (B, L, L)

    scores = session_graph_forward(inputs, mask, mask_repeat, prepared)
    scores = jax.block_until_ready(scores)

    ref = session_graph_reference(inputs, mask, mask_repeat, params)
    assert scores.shape == (B, V - 1)
    # Tolerance accounts for the bf16 embedding / a2 operands of the big matmul.
    assert jnp.allclose(scores, ref, atol=5e-3, rtol=5e-3)

    print("KERNEL_OK")
</pallas_src>

<mosaic_0001>
module attributes {stable_mosaic.version = 11 : i64} {
  func.func @a2_kernel(%arg0: memref<2x8x32xf32, #tpu.memory_space<vmem>>, %arg1: memref<2x32xf32, #tpu.memory_space<vmem>>, %arg2: memref<2x8xf32, #tpu.memory_space<vmem>>, %arg3: memref<64x32xf32, #tpu.memory_space<vmem>>, %arg4: memref<32x64xf32, #tpu.memory_space<vmem>>, %arg5: memref<1x32xf32, #tpu.memory_space<vmem>>, %arg6: memref<2x32xbf16, #tpu.memory_space<vmem>>) attributes {dimension_semantics = [], scalar_prefetch = 0 : i64, scratch_operands = 0 : i64, tpu.core_type = #tpu.core_type<tc>} {
    %c0 = arith.constant 0 : index
    %c0_0 = arith.constant 0 : index
    %c0_1 = arith.constant 0 : index
    %0 = vector.load %arg0[%c0, %c0_0, %c0_1] : memref<2x8x32xf32, #tpu.memory_space<vmem>>, vector<2x8x32xf32>
    %c0_2 = arith.constant 0 : index
    %c0_3 = arith.constant 0 : index
    %1 = vector.load %arg1[%c0_2, %c0_3] : memref<2x32xf32, #tpu.memory_space<vmem>>, vector<2x32xf32>
    %c0_4 = arith.constant 0 : index
    %c0_5 = arith.constant 0 : index
    %2 = vector.load %arg2[%c0_4, %c0_5] : memref<2x8xf32, #tpu.memory_space<vmem>>, vector<2x8xf32>
    %c0_6 = arith.constant 0 : index
    %c0_7 = arith.constant 0 : index
    %3 = vector.load %arg3[%c0_6, %c0_7] : memref<64x32xf32, #tpu.memory_space<vmem>>, vector<64x32xf32>
    %c0_8 = arith.constant 0 : index
    %c0_9 = arith.constant 0 : index
    %4 = vector.load %arg4[%c0_8, %c0_9] : memref<32x64xf32, #tpu.memory_space<vmem>>, vector<32x64xf32>
    %c0_10 = arith.constant 0 : index
    %c0_11 = arith.constant 0 : index
    %5 = vector.load %arg5[%c0_10, %c0_11] : memref<1x32xf32, #tpu.memory_space<vmem>>, vector<1x32xf32>
    %cst = arith.constant dense<0.000000e+00> : vector<2x8x64xf32>
    %6 = tpu.matmul %0, %3, %cst {dimension_numbers = #tpu.dot_dimension_numbers<[2], [1], [0, 1], [0], [0, 0, 0, 1, 1, 0], [], []>} : vector<2x8x32xf32>, vector<64x32xf32>, vector<2x8x64xf32> -> vector<2x8x64xf32>
    %7 = vector.extract_strided_slice %6 {offsets = [0, 0, 0], sizes = [2, 8, 32], strides = [1, 1, 1]} : vector<2x8x64xf32> to vector<2x8x32xf32>
    %8 = vector.extract_strided_slice %6 {offsets = [0, 0, 32], sizes = [2, 8, 32], strides = [1, 1, 1]} : vector<2x8x64xf32> to vector<2x8x32xf32>
    %cst_12 = arith.constant dense<0.000000e+00> : vector<2x8x8xf32>
    %9 = tpu.matmul %7, %8, %cst_12 {dimension_numbers = #tpu.dot_dimension_numbers<[2], [2], [1], [1], [0, 0, 0, 1, 1, 1], [0], [0]>} : vector<2x8x32xf32>, vector<2x8x32xf32>, vector<2x8x8xf32> -> vector<2x8x8xf32>
    %cst_13 = arith.constant 0.176776692 : f32
    %10 = vector.broadcast %cst_13 : f32 to vector<2x8x8xf32>
    %11 = arith.mulf %9, %10 : vector<2x8x8xf32>
    %cst_14 = arith.constant 0.000000e+00 : f32
    %12 = vector.broadcast %cst_14 : f32 to vector<2x8x8xf32>
    %13 = arith.subf %12, %11 : vector<2x8x8xf32>
    %14 = math.exp %13 : vector<2x8x8xf32>
    %cst_15 = arith.constant 1.000000e+00 : f32
    %15 = vector.broadcast %cst_15 : f32 to vector<2x8x8xf32>
    %16 = arith.addf %15, %14 : vector<2x8x8xf32>
    %cst_16 = arith.constant 1.000000e+00 : f32
    %17 = vector.broadcast %cst_16 : f32 to vector<2x8x8xf32>
    %18 = arith.divf %17, %16 : vector<2x8x8xf32>
    %19 = vector.shape_cast %2 : vector<2x8xf32> to vector<2x1x8xf32>
    %20 = vector.broadcast %19 : vector<2x1x8xf32> to vector<2x8x8xf32>
    %21 = arith.mulf %18, %20 : vector<2x8x8xf32>
    %cst_17 = arith.constant dense<0.000000e+00> : vector<2x8xf32>
    %22 = vector.multi_reduction <add>, %21, %cst_17 [2] : vector<2x8x8xf32> to vector<2x8xf32>
    %cst_18 = arith.constant dense<0.000000e+00> : vector<2xf32>
    %23 = vector.multi_reduction <add>, %2, %cst_18 [1] : vector<2x8xf32> to vector<2xf32>
    %24 = vector.shape_cast %23 : vector<2xf32> to vector<2x1xf32>
    %cst_19 = arith.constant 1.000000e+00 : f32
    %25 = vector.broadcast %cst_19 : f32 to vector<2x1xf32>
    %26 = arith.subf %24, %25 : vector<2x1xf32>
    %cst_20 = arith.constant 0.000000e+00 : f32
    %27 = vector.broadcast %cst_20 : f32 to vector<2x1xf32>
    %28 = arith.cmpf oeq, %26, %27 : vector<2x1xf32>
    %cst_21 = arith.constant 1.000000e+00 : f32
    %29 = vector.broadcast %cst_21 : f32 to vector<2x1xf32>
    %30 = arith.select %28, %29, %26 : vector<2x1xi1>, vector<2x1xf32>
    %31 = vector.broadcast %30 : vector<2x1xf32> to vector<2x8xf32>
    %32 = arith.divf %22, %31 : vector<2x8xf32>
    %33 = math.exp %32 : vector<2x8xf32>
    %34 = arith.mulf %33, %2 : vector<2x8xf32>
    %cst_22 = arith.constant dense<0.000000e+00> : vector<2xf32>
    %35 = vector.multi_reduction <add>, %34, %cst_22 [1] : vector<2x8xf32> to vector<2xf32>
    %36 = vector.shape_cast %35 : vector<2xf32> to vector<2x1xf32>
    %37 = vector.broadcast %36 : vector<2x1xf32> to vector<2x8xf32>
    %38 = arith.divf %34, %37 : vector<2x8xf32>
    %39 = vector.shape_cast %38 : vector<2x8xf32> to vector<2x8x1xf32>
    %40 = vector.broadcast %39 : vector<2x8x1xf32> to vector<2x8x32xf32>
    %41 = arith.mulf %40, %0 : vector<2x8x32xf32>
    %cst_23 = arith.constant dense<0.000000e+00> : vector<2x32xf32>
    %42 = vector.multi_reduction <add>, %41, %cst_23 [1] : vector<2x8x32xf32> to vector<2x32xf32>
    %43 = tpu.concatenate %42, %1 in 1 : vector<2x32xf32>, vector<2x32xf32> -> vector<2x64xf32>
    %cst_24 = arith.constant dense<0.000000e+00> : vector<2x32xf32>
    %44 = tpu.matmul %43, %4, %cst_24 {dimension_numbers = #tpu.dot_dimension_numbers<[1], [1], [0], [0], [0, 0, 1, 0], [], []>} : vector<2x64xf32>, vector<32x64xf32>, vector<2x32xf32> -> vector<2x32xf32>
    %45 = vector.broadcast %5 : vector<1x32xf32> to vector<2x32xf32>
    %46 = arith.addf %44, %45 : vector<2x32xf32>
    %47 = arith.truncf %46 : vector<2x32xf32> to vector<2x32xbf16>
    %c0_25 = arith.constant 0 : index
    %c0_26 = arith.constant 0 : index
    %48 = vector.load %arg6[%c0_25, %c0_26] : memref<2x32xbf16, #tpu.memory_space<vmem>>, vector<2x32xbf16>
    tpu.vector_store %arg6[%c0_25, %c0_26], %47 {strides = array<i32>} : memref<2x32xbf16, #tpu.memory_space<vmem>>, vector<2x32xbf16>,
    return
  }
}

</mosaic_0001>

<llo_original>
// kernel: tpu_custom_call.1
$region0: #{tpu_custom_call.1}
  #allocation0 [shape = 'u32[]', space=smem, size = 0x4, offset = 0x4, fixed_abs, tag = 'smem constant byte address 0x4 - core index']
  #allocation1 [shape = 'u32[144,128]{1,0:T(1,128)}', space=vmem, size = 0x12000, scoped, tag = 'internal scratch']
  %s0 = inlined_call_operand.vmem [shape: f32[2,8,32], index: 0, kind: input, shape index: {}]
  %s1 = inlined_call_operand.vmem [shape: f32[2,32], index: 1, kind: input, shape index: {}]
  %s2 = inlined_call_operand.vmem [shape: f32[2,8], index: 2, kind: input, shape index: {}]
  %s3 = inlined_call_operand.vmem [shape: f32[64,32], index: 3, kind: input, shape index: {}]
  %s4 = inlined_call_operand.vmem [shape: f32[32,64], index: 4, kind: input, shape index: {}]
  %s5 = inlined_call_operand.vmem [shape: f32[1,32], index: 5, kind: input, shape index: {}]
  %s6 = inlined_call_operand.hbm [shape: bf16[2,32], index: 6, kind: output, shape index: {}]
  %s7 = sld [smem:[#allocation0]]
  $region34: #{tpu_custom_call.1} parent=0
    _
  %s9 = ssub.s32 1, %s7
  %s10 = scalar_select 0, %s9, %s7
  $region1: #{tpu_custom_call.1} parent=0
    #allocation2 [shape = 'u8[512]{0}', space=vmem, size = 0x400, scoped, tag = 'output window, operand 0, single buffered']
    #allocation3 [shape = 's32[1]{0}', space=sflag, size = 0x4, scoped, tag = 'scoped memory for tpu_custom_call.1']
    %11 = vsyncpa [#allocation3], 0
    // Predicated region
    $region2: #{tpu_custom_call.1} parent=1 // pred_check
      _
    $region3: #{tpu_custom_call.1} parent=1 // pred_check_branch
      %13 = sbr.rel (0) target = $region5
    $region4: #{tpu_custom_call.1} parent=1 // pred_region
      _
    $region5: #{tpu_custom_call.1} parent=1 // pred_fallthru
      _
    // Predicated region
    $region6: #{tpu_custom_call.1} parent=1 // pred_check
      _
    $region7: #{tpu_custom_call.1} parent=1 // pred_check_branch
      %15 = sbr.rel (0) target = $region9
    $region8: #{tpu_custom_call.1} parent=1 // pred_region
      _
    $region9: #{tpu_custom_call.1} parent=1 // pred_fallthru
      _
    // Predicated region
    $region10: #{tpu_custom_call.1} parent=1 // pred_check
      _
    $region11: #{tpu_custom_call.1} parent=1 // pred_check_branch
      %17 = sbr.rel (0) target = $region13
    $region12: #{tpu_custom_call.1} parent=1 // pred_region
      _
    $region13: #{tpu_custom_call.1} parent=1 // pred_fallthru
      _
    // Predicated region
    $region14: #{tpu_custom_call.1} parent=1 // pred_check
      _
    $region15: #{tpu_custom_call.1} parent=1 // pred_check_branch
      %19 = sbr.rel (0) target = $region17
    $region16: #{tpu_custom_call.1} parent=1 // pred_region
      _
    $region17: #{tpu_custom_call.1} parent=1 // pred_fallthru
      _
    // Predicated region
    $region18: #{tpu_custom_call.1} parent=1 // pred_check
      _
    $region19: #{tpu_custom_call.1} parent=1 // pred_check_branch
      %21 = sbr.rel (0) target = $region21
    $region20: #{tpu_custom_call.1} parent=1 // pred_region
      _
    $region21: #{tpu_custom_call.1} parent=1 // pred_fallthru
      _
    // Predicated region
    $region22: #{tpu_custom_call.1} parent=1 // pred_check
      _
    $region23: #{tpu_custom_call.1} parent=1 // pred_check_branch
      %23 = sbr.rel (0) target = $region25
    $region24: #{tpu_custom_call.1} parent=1 // pred_region
      _
    $region25: #{tpu_custom_call.1} parent=1 // pred_fallthru
      _
    %v24 = vld [vmem:[%s0] sm:$0xff]
    %v25 = vld [vmem:[%s0 + $0x8] sm:$0xff]
    %v26 = vld [vmem:[%s1] sm:$0x3]
    %v27 = vld [vmem:[%s2] sm:$0x3]
    %v28 = vld [vmem:[%s3] sm:$0xff]
    %v29 = vld [vmem:[%s3 + $0x8] sm:$0xff]
    %v30 = vld [vmem:[%s3 + $0x10] sm:$0xff]
    %v31 = vld [vmem:[%s3 + $0x18] sm:$0xff]
    %v32 = vld [vmem:[%s3 + $0x20] sm:$0xff]
    %v33 = vld [vmem:[%s3 + $0x28] sm:$0xff]
    %v34 = vld [vmem:[%s3 + $0x30] sm:$0xff]
    %v35 = vld [vmem:[%s3 + $0x38] sm:$0xff]
    %v36 = vld [vmem:[%s4] sm:$0xff]
    %v37 = vld [vmem:[%s4 + $0x8] sm:$0xff]
    %v38 = vld [vmem:[%s4 + $0x10] sm:$0xff]
    %v39 = vld [vmem:[%s4 + $0x18] sm:$0xff]
    %v40 = vld [vmem:[%s5] sm:$0x1]
    %vm41 = vcmask 261120
    %v43 = vsel %vm41, %v24, 0
    %v46 = vsel %vm41, %v25, 0
    %v49 = vsel %vm41, %v28, 0
    %v52 = vsel %vm41, %v29, 0
    %v55 = vsel %vm41, %v30, 0
    %v58 = vsel %vm41, %v31, 0
    %v61 = vsel %vm41, %v32, 0
    %v64 = vsel %vm41, %v33, 0
    %v67 = vsel %vm41, %v34, 0
    %v70 = vsel %vm41, %v35, 0
    %72 = vmatprep.subr.mxu0 0.0
    %73 = vmatpush1.xpose.msra.mxu0 %v49
    %74 = vmatprep.subr.mxu0 0.0
    %75 = vmatpush1.xpose.msra.mxu0 %v52
    %76 = vmatprep.subr.mxu0 0.0
    %77 = vmatpush1.xpose.msra.mxu0 %v55
    %78 = vmatprep.subr.mxu0 0.0
    %79 = vmatpush1.xpose.msra.mxu0 %v58
    %80 = vmatprep.subr.mxu0 0.0
    %81 = vmatpush1.xpose.msra.mxu0 %v61
    %82 = vmatprep.subr.mxu0 0.0
    %83 = vmatpush1.xpose.msra.mxu0 %v64
    %84 = vmatprep.subr.mxu0 0.0
    %85 = vmatpush1.xpose.msra.mxu0 %v67
    %86 = vmatprep.subr.mxu0 0.0
    %87 = vmatpush1.xpose.msra.mxu0 %v70
    %88 = vmatprep.subr.mxu0 0.0
    %89 = vmatpush1.xpose.msra.mxu0 0.0
    %90 = vmatprep.subr.mxu0 0.0
    %91 = vmatpush1.xpose.msra.mxu0 0.0
    %92 = vmatprep.subr.mxu0 0.0
    %93 = vmatpush1.xpose.msra.mxu0 0.0
    %94 = vmatprep.subr.mxu0 0.0
    %95 = vmatpush1.xpose.msra.mxu0 0.0
    %96 = vmatprep.subr.mxu0 0.0
    %97 = vmatpush1.xpose.msra.mxu0 0.0
    %98 = vmatprep.subr.mxu0 0.0
    %99 = vmatpush1.xpose.msra.mxu0 0.0
    %100 = vmatprep.subr.mxu0 0.0
    %101 = vmatpush1.xpose.msra.mxu0 0.0
    %102 = vmatprep.subr.mxu0 0.0
    %103 = vmatpush1.xpose.msra.mxu0 0.0
    %104 = vmatprep.subr.mxu0 0.0
    %105 = vmatpush1.xpose.msra.mxu0 0.0
    %106 = vmatprep.subr.mxu0 0.0
    %107 = vmatpush1.xpose.msra.mxu0 0.0
    %108 = vmatprep.subr.mxu0 0.0
    %109 = vmatpush1.xpose.msra.mxu0 0.0
    %110 = vmatprep.subr.mxu0 0.0
    %111 = vmatpush1.xpose.msra.mxu0 0.0
    %112 = vmatprep.subr.mxu0 0.0
    %113 = vmatpush1.xpose.msra.mxu0 0.0
    %114 = vmatprep.subr.mxu0 0.0
    %115 = vmatpush1.xpose.msra.mxu0 0.0
    %116 = vmatprep.subr.mxu0 0.0
    %117 = vmatpush1.xpose.msra.mxu0 0.0
    %118 = vmatprep.subr.mxu0 0.0
    %119 = vmatpush1.xpose.msra.mxu0 0.0
    %120 = vmatprep.subr.mxu0 0.0
    %121 = vmatpush1.xpose.msra.mxu0 0.0
    %122 = vmatprep.subr.mxu0 0.0
    %123 = vmatpush1.xpose.msra.mxu0 0.0
    %124 = vmatprep.subr.mxu0 0.0
    %125 = vmatpush1.xpose.msra.mxu0 0.0
    %126 = vmatprep.subr.mxu0 0.0
    %127 = vmatpush1.xpose.msra.mxu0 0.0
    %128 = vmatprep.subr.mxu0 0.0
    %129 = vmatpush1.xpose.msra.mxu0 0.0
    %130 = vmatprep.subr.mxu0 0.0
    %131 = vmatpush1.xpose.msra.mxu0 0.0
    %132 = vmatprep.subr.mxu0 0.0
    %133 = vmatpush1.xpose.msra.mxu0 0.0
    %134 = vmatprep.subr.mxu0 0.0
    %135 = vmatpush1.xpose.msra.mxu0 0.0
    %136 = vmatprep.mubr.f32.mxu0 0.0
    %137 = vmatmul.mubr.f32.gmra.mrb[0].mxu0 %v43
    %v138 = vpop.f32.mrb[0].mxu0
    %v139 = vadd.f32 0.0, %v138
    %v140 = vpop.f32.mrb[0].mxu0
    %141 = vmatprep.mubr.f32.mxu0 0.0
    %142 = vmatmul.mubr.f32.gmra.mrb[0].mxu0 %v46
    %v143 = vpop.f32.mrb[0].mxu0
    %v144 = vadd.f32 0.0, %v143
    %v145 = vpop.f32.mrb[0].mxu0
    %146 = vdwg.mxu0
    %148 = vrot.lane.b32.xlu0 %v139, 96
    %v149 = vpop.permute.xlu0 %148
    %v150 = vsel %vm41, %v139, 0
    %v152 = vsel %vm41, %v149, 0
    %154 = vmatprep.subr.mxu0 0.0
    %155 = vmatpush1.xpose.msra.mxu0 %v152
    %156 = vmatprep.subr.mxu0 0.0
    %157 = vmatpush1.xpose.msra.mxu0 0.0
    %158 = vmatprep.subr.mxu0 0.0
    %159 = vmatpush1.xpose.msra.mxu0 0.0
    %160 = vmatprep.subr.mxu0 0.0
    %161 = vmatpush1.xpose.msra.mxu0 0.0
    %162 = vmatprep.subr.mxu0 0.0
    %163 = vmatpush1.xpose.msra.mxu0 0.0
    %164 = vmatprep.subr.mxu0 0.0
    %165 = vmatpush1.xpose.msra.mxu0 0.0
    %166 = vmatprep.subr.mxu0 0.0
    %167 = vmatpush1.xpose.msra.mxu0 0.0
    %168 = vmatprep.subr.mxu0 0.0
    %169 = vmatpush1.xpose.msra.mxu0 0.0
    %170 = vmatprep.subr.mxu0 0.0
    %171 = vmatpush1.xpose.msra.mxu0 0.0
    %172 = vmatprep.subr.mxu0 0.0
    %173 = vmatpush1.xpose.msra.mxu0 0.0
    %174 = vmatprep.subr.mxu0 0.0
    %175 = vmatpush1.xpose.msra.mxu0 0.0
    %176 = vmatprep.subr.mxu0 0.0
    %177 = vmatpush1.xpose.msra.mxu0 0.0
    %178 = vmatprep.subr.mxu0 0.0
    %179 = vmatpush1.xpose.msra.mxu0 0.0
    %180 = vmatprep.subr.mxu0 0.0
    %181 = vmatpush1.xpose.msra.mxu0 0.0
    %182 = vmatprep.subr.mxu0 0.0
    %183 = vmatpush1.xpose.msra.mxu0 0.0
    %184 = vmatprep.subr.mxu0 0.0
    %185 = vmatpush1.xpose.msra.mxu0 0.0
    %186 = vmatprep.subr.mxu0 0.0
    %187 = vmatpush1.xpose.msra.mxu0 0.0
    %188 = vmatprep.subr.mxu0 0.0
    %189 = vmatpush1.xpose.msra.mxu0 0.0
    %190 = vmatprep.subr.mxu0 0.0
    %191 = vmatpush1.xpose.msra.mxu0 0.0
    %192 = vmatprep.subr.mxu0 0.0
    %193 = vmatpush1.xpose.msra.mxu0 0.0
    %194 = vmatprep.subr.mxu0 0.0
    %195 = vmatpush1.xpose.msra.mxu0 0.0
    %196 = vmatprep.subr.mxu0 0.0
    %197 = vmatpush1.xpose.msra.mxu0 0.0
    %198 = vmatprep.subr.mxu0 0.0
    %199 = vmatpush1.xpose.msra.mxu0 0.0
    %200 = vmatprep.subr.mxu0 0.0
    %201 = vmatpush1.xpose.msra.mxu0 0.0
    %202 = vmatprep.subr.mxu0 0.0
    %203 = vmatpush1.xpose.msra.mxu0 0.0
    %204 = vmatprep.subr.mxu0 0.0
    %205 = vmatpush1.xpose.msra.mxu0 0.0
    %206 = vmatprep.subr.mxu0 0.0
    %207 = vmatpush1.xpose.msra.mxu0 0.0
    %208 = vmatprep.subr.mxu0 0.0
    %209 = vmatpush1.xpose.msra.mxu0 0.0
    %210 = vmatprep.subr.mxu0 0.0
    %211 = vmatpush1.xpose.msra.mxu0 0.0
    %212 = vmatprep.subr.mxu0 0.0
    %213 = vmatpush1.xpose.msra.mxu0 0.0
    %214 = vmatprep.subr.mxu0 0.0
    %215 = vmatpush1.xpose.msra.mxu0 0.0
    %216 = vmatprep.subr.mxu0 0.0
    %217 = vmatpush1.xpose.msra.mxu0 0.0
    %218 = vmatprep.mubr.f32.mxu0 0.0
    %219 = vmatmul.mubr.f32.gmra.mrb[0].mxu0 %v150
    %v220 = vpop.f32.mrb[0].mxu0
    %v221 = vadd.f32 0.0, %v220
    %v222 = vpop.f32.mrb[0].mxu0
    %223 = vdwg.mxu0
    %225 = vrot.lane.b32.xlu0 %v144, 96
    %v226 = vpop.permute.xlu0 %225
    %v227 = vsel %vm41, %v144, 0
    %v229 = vsel %vm41, %v226, 0
    %231 = vmatprep.subr.mxu0 0.0
    %232 = vmatpush1.xpose.msra.mxu0 %v229
    %233 = vmatprep.subr.mxu0 0.0
    %234 = vmatpush1.xpose.msra.mxu0 0.0
    %235 = vmatprep.subr.mxu0 0.0
    %236 = vmatpush1.xpose.msra.mxu0 0.0
    %237 = vmatprep.subr.mxu0 0.0
    %238 = vmatpush1.xpose.msra.mxu0 0.0
    %239 = vmatprep.subr.mxu0 0.0
    %240 = vmatpush1.xpose.msra.mxu0 0.0
    %241 = vmatprep.subr.mxu0 0.0
    %242 = vmatpush1.xpose.msra.mxu0 0.0
    %243 = vmatprep.subr.mxu0 0.0
    %244 = vmatpush1.xpose.msra.mxu0 0.0
    %245 = vmatprep.subr.mxu0 0.0
    %246 = vmatpush1.xpose.msra.mxu0 0.0
    %247 = vmatprep.subr.mxu0 0.0
    %248 = vmatpush1.xpose.msra.mxu0 0.0
    %249 = vmatprep.subr.mxu0 0.0
    %250 = vmatpush1.xpose.msra.mxu0 0.0
    %251 = vmatprep.subr.mxu0 0.0
    %252 = vmatpush1.xpose.msra.mxu0 0.0
    %253 = vmatprep.subr.mxu0 0.0
    %254 = vmatpush1.xpose.msra.mxu0 0.0
    %255 = vmatprep.subr.mxu0 0.0
    %256 = vmatpush1.xpose.msra.mxu0 0.0
    %257 = vmatprep.subr.mxu0 0.0
    %258 = vmatpush1.xpose.msra.mxu0 0.0
    %259 = vmatprep.subr.mxu0 0.0
    %260 = vmatpush1.xpose.msra.mxu0 0.0
    %261 = vmatprep.subr.mxu0 0.0
    %262 = vmatpush1.xpose.msra.mxu0 0.0
    %263 = vmatprep.subr.mxu0 0.0
    %264 = vmatpush1.xpose.msra.mxu0 0.0
    %265 = vmatprep.subr.mxu0 0.0
    %266 = vmatpush1.xpose.msra.mxu0 0.0
    %267 = vmatprep.subr.mxu0 0.0
    %268 = vmatpush1.xpose.msra.mxu0 0.0
    %269 = vmatprep.subr.mxu0 0.0
    %270 = vmatpush1.xpose.msra.mxu0 0.0
    %271 = vmatprep.subr.mxu0 0.0
    %272 = vmatpush1.xpose.msra.mxu0 0.0
    %273 = vmatprep.subr.mxu0 0.0
    %274 = vmatpush1.xpose.msra.mxu0 0.0
    %275 = vmatprep.subr.mxu0 0.0
    %276 = vmatpush1.xpose.msra.mxu0 0.0
    %277 = vmatprep.subr.mxu0 0.0
    %278 = vmatpush1.xpose.msra.mxu0 0.0
    %279 = vmatprep.subr.mxu0 0.0
    %280 = vmatpush1.xpose.msra.mxu0 0.0
    %281 = vmatprep.subr.mxu0 0.0
    %282 = vmatpush1.xpose.msra.mxu0 0.0
    %283 = vmatprep.subr.mxu0 0.0
    %284 = vmatpush1.xpose.msra.mxu0 0.0
    %285 = vmatprep.subr.mxu0 0.0
    %286 = vmatpush1.xpose.msra.mxu0 0.0
    %287 = vmatprep.subr.mxu0 0.0
    %288 = vmatpush1.xpose.msra.mxu0 0.0
    %289 = vmatprep.subr.mxu0 0.0
    %290 = vmatpush1.xpose.msra.mxu0 0.0
    %291 = vmatprep.subr.mxu0 0.0
    %292 = vmatpush1.xpose.msra.mxu0 0.0
    %293 = vmatprep.subr.mxu0 0.0
    %294 = vmatpush1.xpose.msra.mxu0 0.0
    %295 = vmatprep.mubr.f32.mxu0 0.0
    %296 = vmatmul.mubr.f32.gmra.mrb[0].mxu0 %v227
    %v297 = vpop.f32.mrb[0].mxu0
    %v298 = vadd.f32 0.0, %v297
    %v299 = vpop.f32.mrb[0].mxu0
    %300 = vdwg.mxu0
    %v301 = vmul.f32 %v221, 0.17677669
    %v302 = vmul.f32 %v298, 0.17677669
    %v303 = vsub.f32 0.0, %v301
    %v304 = vsub.f32 0.0, %v302
    %v305 = vmul.f32 %v303, 1.442695
    %v306 = vpow.pop %v305
    %v307 = vmul.f32 %v304, 1.442695
    %v308 = vpow.pop %v307
    %v309 = vadd.f32 %v306, 1.0
    %v310 = vadd.f32 %v308, 1.0
    %v311 = vrcp.pop %v309
    %v312 = vmul.f32 1.0, %v311
    %v313 = vrcp.pop %v310
    %v314 = vmul.f32 1.0, %v313
    %v317 = vunpack.c.l.s4 1966171168
    %v318 = vunpack.c.0.s8 %v317
    %v319 = vlaneseq
    %v320 = vshrl.u32 %v319, 7
    %v321 = vsub.s32 %v318, %v320
    %v322 = vrot.slane %v27, %v321
    %v323 = vcombine.high %v322, %v322
    %v325 = vunpack.c.l.s4 1966171168
    %v326 = vunpack.c.0.s8 %v325
    %v327 = vlaneseq
    %v328 = vshrl.u32 %v327, 7
    %v329 = vsub.s32 %v326, %v328
    %v330 = vrot.slane %v322, %v329
    %v332 = vunpack.c.l.s4 1966171168
    %v333 = vunpack.c.0.s8 %v332
    %v334 = vlaneseq
    %v335 = vshrl.u32 %v334, 7
    %v336 = vsub.s32 %v333, %v335
    %v337 = vrot.slane %v323, %v336
    %v338 = vlaneseq
    %v339 = vshrl.u32 %v338, 7
    %v340 = vsub.s32 0, %v339
    %v341 = vrot.slane %v330, %v340
    %v342 = vlaneseq
    %v343 = vshrl.u32 %v342, 7
    %v344 = vsub.s32 0, %v343
    %v345 = vrot.slane %v337, %v344
    %v348 = vmul.f32 %v312, %v341
    %v349 = vmul.f32 %v314, %v345
    %vm350 = vcmask 64512
    %v351 = vsel %vm350, %v348, 0.0
    %352 = vadd.xlane.f32.xlu0 %v351
    %v353 = vpop.xlane.xlu0 %352
    %v354 = vsel %vm350, %v349, 0.0
    %355 = vadd.xlane.f32.xlu0 %v354
    %v356 = vpop.xlane.xlu0 %355
    %vm357 = vcmask 58368
    %v358 = vsel %vm357, %v27, 0.0
    %359 = vadd.xlane.f32.xlu0 %v358
    %v360 = vpop.xlane.xlu0 %359
    %v361 = vsub.f32 %v360, 1.0
    %vm362 = vcmp.eq.f32.partialorder %v361, 0.0
    %v363 = vsel %vm362, 1.0, %v361
    %v365 = vlaneseq
    %v366 = vshrl.u32 %v365, 7
    %v367 = vsub.s32 0, %v366
    %v368 = vrot.slane %v363, %v367
    %v369 = vlaneseq
    %v370 = vshrl.u32 %v369, 7
    %v371 = vsub.s32 1, %v370
    %v372 = vrot.slane %v363, %v371
    %v375 = vrcp.pop %v368
    %v376 = vmul.f32 %v353, %v375
    %v377 = vrcp.pop %v372
    %v378 = vmul.f32 %v356, %v377
    %v379 = vmul.f32 %v376, 1.442695
    %v380 = vpow.pop %v379
    %v381 = vmul.f32 %v378, 1.442695
    %v382 = vpow.pop %v381
    %v383 = vlaneseq
    %v384 = vshrl.u32 %v383, 7
    %v385 = vsub.s32 0, %v384
    %v386 = vrot.slane %v27, %v385
    %388 = vbcast.lane.b32.xlu0 %v386, 256
    %v389 = vpop.permute.xlu0 %388
    %v390 = vlaneseq
    %v391 = vshrl.u32 %v390, 7
    %v392 = vsub.s32 1, %v391
    %v393 = vrot.slane %v27, %v392
    %395 = vbcast.lane.b32.xlu0 %v393, 256
    %v396 = vpop.permute.xlu0 %395
    %v399 = vmul.f32 %v380, %v389
    %v400 = vmul.f32 %v382, %v396
    %403 = vset.pattern.permute.xlu0 0
    %404 = vperm.xlu0 %403, %v399
    %v405 = vpop.permute.xlu0 %404
    %406 = vset.pattern.permute.xlu0 0
    %407 = vperm.xlu0 %406, %v400
    %v408 = vpop.permute.xlu0 %407
    %v409 = vlaneseq
    %v410 = vand.u32 %v409, 127
    %v411 = vlaneseq
    %v412 = vshrl.u32 %v411, 7
    %v413 = vsub.s32 %v410, %v412
    %v414 = vrot.slane %v405, %v413
    %v415 = vlaneseq
    %v416 = vshrl.u32 %v415, 7
    %v417 = vsub.s32 %v410, %v416
    %v418 = vrot.slane %v408, %v417
    %vm419 = vcmask 1041409
    %v420 = vsel %vm419, %v418, %v414
    %v422 = vsel %vm357, %v420, 0.0
    %423 = vadd.xlane.f32.xlu0 %v422
    %v424 = vpop.xlane.xlu0 %423
    %v426 = vlaneseq
    %v427 = vshrl.u32 %v426, 7
    %v428 = vsub.s32 0, %v427
    %v429 = vrot.slane %v424, %v428
    %v430 = vlaneseq
    %v431 = vshrl.u32 %v430, 7
    %v432 = vsub.s32 1, %v431
    %v433 = vrot.slane %v424, %v432
    %v436 = vrcp.pop %v429
    %v437 = vmul.f32 %v399, %v436
    %v438 = vrcp.pop %v433
    %v439 = vmul.f32 %v400, %v438
    %441 = vset.pattern.permute.xlu0 0
    %442 = vperm.xlu0 %441, %v437
    %v443 = vpop.permute.xlu0 %442
    %446 = vset.pattern.permute.xlu0 0
    %447 = vperm.xlu0 %446, %v439
    %v448 = vpop.permute.xlu0 %447
    %v450 = vmul.f32 %v443, %v24
    %v451 = vmul.f32 %v448, %v25
    %v452 = vsel %vm41, %v450, 0.0
    %v453 = vrot.slane %v452, 4
    %v454 = vadd.f32 %v452, %v453
    %v455 = vrot.slane %v454, 2
    %v456 = vadd.f32 %v454, %v455
    %v457 = vrot.slane %v456, 1
    %v458 = vadd.f32 %v456, %v457
    %v459 = vsel %vm41, %v451, 0.0
    %v460 = vrot.slane %v459, 4
    %v461 = vadd.f32 %v459, %v460
    %v462 = vrot.slane %v461, 2
    %v463 = vadd.f32 %v461, %v462
    %v464 = vrot.slane %v463, 1
    %v465 = vadd.f32 %v463, %v464
    %v468 = vsel %vm419, %v465, %v458
    %471 = vrot.lane.b32.xlu0 %v26, 32
    %v472 = vpop.permute.xlu0 %471
    %v474 = vsel %vm41, %v468, %v472
    %v476 = vlaneseq
    %v477 = vshrl.u32 %v476, 7
    %v478 = vsub.s32 0, %v477
    %v479 = vrot.slane %v40, %v478
    %vm481 = vcmask 523264
    %v483 = vsel %vm481, %v474, 0
    %v486 = vsel %vm481, %v36, 0
    %v489 = vsel %vm481, %v37, 0
    %v492 = vsel %vm481, %v38, 0
    %v495 = vsel %vm481, %v39, 0
    %497 = vmatprep.subr.mxu0 0.0
    %498 = vmatpush1.xpose.msra.mxu0 %v486
    %499 = vmatprep.subr.mxu0 0.0
    %500 = vmatpush1.xpose.msra.mxu0 %v489
    %501 = vmatprep.subr.mxu0 0.0
    %502 = vmatpush1.xpose.msra.mxu0 %v492
    %503 = vmatprep.subr.mxu0 0.0
    %504 = vmatpush1.xpose.msra.mxu0 %v495
    %505 = vmatprep.subr.mxu0 0.0
    %506 = vmatpush1.xpose.msra.mxu0 0.0
    %507 = vmatprep.subr.mxu0 0.0
    %508 = vmatpush1.xpose.msra.mxu0 0.0
    %509 = vmatprep.subr.mxu0 0.0
    %510 = vmatpush1.xpose.msra.mxu0 0.0
    %511 = vmatprep.subr.mxu0 0.0
    %512 = vmatpush1.xpose.msra.mxu0 0.0
    %513 = vmatprep.subr.mxu0 0.0
    %514 = vmatpush1.xpose.msra.mxu0 0.0
    %515 = vmatprep.subr.mxu0 0.0
    %516 = vmatpush1.xpose.msra.mxu0 0.0
    %517 = vmatprep.subr.mxu0 0.0
    %518 = vmatpush1.xpose.msra.mxu0 0.0
    %519 = vmatprep.subr.mxu0 0.0
    %520 = vmatpush1.xpose.msra.mxu0 0.0
    %521 = vmatprep.subr.mxu0 0.0
    %522 = vmatpush1.xpose.msra.mxu0 0.0
    %523 = vmatprep.subr.mxu0 0.0
    %524 = vmatpush1.xpose.msra.mxu0 0.0
    %525 = vmatprep.subr.mxu0 0.0
    %526 = vmatpush1.xpose.msra.mxu0 0.0
    %527 = vmatprep.subr.mxu0 0.0
    %528 = vmatpush1.xpose.msra.mxu0 0.0
    %529 = vmatprep.subr.mxu0 0.0
    %530 = vmatpush1.xpose.msra.mxu0 0.0
    %531 = vmatprep.subr.mxu0 0.0
    %532 = vmatpush1.xpose.msra.mxu0 0.0
    %533 = vmatprep.subr.mxu0 0.0
    %534 = vmatpush1.xpose.msra.mxu0 0.0
    %535 = vmatprep.subr.mxu0 0.0
    %536 = vmatpush1.xpose.msra.mxu0 0.0
    %537 = vmatprep.subr.mxu0 0.0
    %538 = vmatpush1.xpose.msra.mxu0 0.0
    %539 = vmatprep.subr.mxu0 0.0
    %540 = vmatpush1.xpose.msra.mxu0 0.0
    %541 = vmatprep.subr.mxu0 0.0
    %542 = vmatpush1.xpose.msra.mxu0 0.0
    %543 = vmatprep.subr.mxu0 0.0
    %544 = vmatpush1.xpose.msra.mxu0 0.0
    %545 = vmatprep.subr.mxu0 0.0
    %546 = vmatpush1.xpose.msra.mxu0 0.0
    %547 = vmatprep.subr.mxu0 0.0
    %548 = vmatpush1.xpose.msra.mxu0 0.0
    %549 = vmatprep.subr.mxu0 0.0
    %550 = vmatpush1.xpose.msra.mxu0 0.0
    %551 = vmatprep.subr.mxu0 0.0
    %552 = vmatpush1.xpose.msra.mxu0 0.0
    %553 = vmatprep.subr.mxu0 0.0
    %554 = vmatpush1.xpose.msra.mxu0 0.0
    %555 = vmatprep.subr.mxu0 0.0
    %556 = vmatpush1.xpose.msra.mxu0 0.0
    %557 = vmatprep.subr.mxu0 0.0
    %558 = vmatpush1.xpose.msra.mxu0 0.0
    %559 = vmatprep.subr.mxu0 0.0
    %560 = vmatpush1.xpose.msra.mxu0 0.0
    %561 = vmatprep.mubr.f32.mxu0 0.0
    %562 = vmatmul.mubr.f32.gmra.mrb[0].mxu0 %v483
    %v563 = vpop.f32.mrb[0].mxu0
    %v564 = vadd.f32 %v479, %v563
    %v565 = vpop.f32.mrb[0].mxu0
    %566 = vdwg.mxu0
    %v567 = vpack.c.bf16 %v564, %v564
    %vm568 = vcmask 253952
    %569 = vst.msk [vmem:[#allocation2] sm:$0x1] %vm568, %v567
    // Predicated region
    $region26: #{tpu_custom_call.1} parent=1 // pred_check
      _
    $region27: #{tpu_custom_call.1} parent=1 // pred_check_branch
      %571 = sbr.rel (0) target = $region29
    $region28: #{tpu_custom_call.1} parent=1 // pred_region
      %s573 = ssub.s32 16, 16
      %574 = vsyncadd [#allocation3], %s573
      %s576 = sshll.u32 [#allocation2], 4
      %s577 = int_to_ptr.vmem [resolvable:$true] %s576
      %579 = dma.vmem_to_hbm [thread:$0]  %s577, 16, %s6, [#allocation3]
    $region29: #{tpu_custom_call.1} parent=1 // pred_fallthru
      _
    // Predicated region
    $region30: #{tpu_custom_call.1} parent=1 // pred_check
      _
    $region31: #{tpu_custom_call.1} parent=1 // pred_check_branch
      %581 = sbr.rel (0) target = $region33
    $region32: #{tpu_custom_call.1} parent=1 // pred_region
      %582 = dma.done [#allocation3], 16
    $region33: #{tpu_custom_call.1} parent=1 // pred_fallthru
      _
    %583 = vsyncpa [#allocation3], 1

</llo_original>
